<compile_context>
chip_gen: v5e
topology: v5e:2x2
jax: 0.10.0
libtpu: 0.0.40
codegen_flags: <defaults>
</compile_context>

<pallas_src>
import math

import jax
import jax.numpy as jnp
from jax.experimental import pallas as pl
from jax.experimental.pallas import tpu as pltpu

_TARGET_BLOCK_BYTES = 4 * 1024 * 1024    # ~4 MiB blocks: near the measured roofline plateau
_VMEM_LIMIT_BYTES = 48 * 1024 * 1024     # safe on every generation (v7x has 64 MiB / TC)
_SUBLANE = 32                            # row-tile multiple covering f32/bf16/int8 packing
_LANE = 128
# Preferred lane-dense slab widths (elements), widest first.
_WIDTH_CANDIDATES = (8192, 4096, 2048, 1024, 512, 256, 128)


def _copy_kernel(x_ref, o_ref):
    # Pure identity copy of one lane-dense, HBM-contiguous tile.
    o_ref[...] = x_ref[...]


def _choose_slab(shape, total):
    """Factorize `total` elements into a (rows, feat) slab with lane-dense feat."""
    # Prefer widths that divide total exactly and leave >= 2 rows.
    for w in _WIDTH_CANDIDATES:
        if total % w == 0 and total // w >= 2:
            return total // w, w
    for w in _WIDTH_CANDIDATES:
        if total % w == 0:
            return total // w, w
    # Fallback: semantic (batch, rest) factorization.  Still correct (Pallas
    # masks remainder blocks), just potentially not lane-dense.
    rows = shape[0]
    return rows, total // rows


def _choose_tiles(rows, feat, itemsize):
    """Pick (tile_rows, tile_feat) sized by BYTES, biased to full-width rows."""
    # Feature tile: full width whenever _SUBLANE rows of it still fit the block
    # budget (keeps every block DMA one contiguous burst); otherwise a large
    # multiple of 128 lanes.
    if feat * itemsize * min(rows, _SUBLANE) <= _TARGET_BLOCK_BYTES:
        tile_f = feat
    else:
        tile_f = min(
            feat,
            max(_LANE, (_TARGET_BLOCK_BYTES // (_SUBLANE * itemsize)) // _LANE * _LANE),
        )
    # Row tile: as many rows as fit the budget; multiple of 32 (covers
    # f32/bf16/int8 sublane packing) or the full extent.
    rows_fit = max(1, _TARGET_BLOCK_BYTES // (tile_f * itemsize))
    if rows <= rows_fit:
        tile_r = rows
    else:
        tile_r = max(_SUBLANE, (rows_fit // _SUBLANE) * _SUBLANE)
    return tile_r, tile_f


def flatten_pallas(
    x: jax.Array,
    start_dim: int = 1,
    end_dim: int = -1,
    *,
    donate: bool = False,
) -> jax.Array:
    """Pallas equivalent of Flatten.forward (torch.reshape semantics)."""
    nd = x.ndim
    sd = start_dim if start_dim >= 0 else nd + start_dim
    ed = end_dim if end_dim >= 0 else nd + end_dim
    if nd > 0 and not (0 <= sd <= ed < nd):
        raise ValueError(f"invalid flatten dims start_dim={start_dim}, end_dim={end_dim}")

    before = x.shape[:sd]
    mid = x.shape[sd:ed + 1]
    after = x.shape[ed + 1:]
    flat = int(math.prod(mid)) if mid else 1
    out_shape = tuple(before) + (flat,) + tuple(after)

    # Degenerate cases: nothing to flatten, 0-d/1-d, or empty tensor -> the
    # reshape is pure metadata, no kernel needed.
    total = int(math.prod(x.shape)) if x.shape else 1
    if out_shape == x.shape or nd < 2 or total == 0:
        return jnp.reshape(x, out_shape)

    itemsize = jnp.dtype(x.dtype).itemsize

    # Lane-dense, HBM-contiguous 2D view of the same elements (trace-level, free).
    rows, feat = _choose_slab(x.shape, total)
    x2 = jnp.reshape(x, (rows, feat))

    tile_r, tile_f = _choose_tiles(rows, feat, itemsize)
    grid = (pl.cdiv(rows, tile_r), pl.cdiv(feat, tile_f))

    extra = {"input_output_aliases": {0: 0}} if donate else {}

    y2 = pl.pallas_call(
        _copy_kernel,
        out_shape=jax.ShapeDtypeStruct((rows, feat), x.dtype),
        grid=grid,
        in_specs=[pl.BlockSpec((tile_r, tile_f), lambda i, j: (i, j))],
        out_specs=pl.BlockSpec((tile_r, tile_f), lambda i, j: (i, j)),
        compiler_params=pltpu.CompilerParams(
            dimension_semantics=("parallel", "parallel"),
            vmem_limit_bytes=_VMEM_LIMIT_BYTES,
        ),
        cost_estimate=pl.CostEstimate(
            flops=0,
            transcendentals=0,
            bytes_accessed=2 * total * itemsize,
        ),
        **extra,
    )(x2)

    # Final reshape to the requested flatten output shape (metadata-only).
    return jnp.reshape(y2, out_shape)


if __name__ == "__main__":
    key = jax.random.PRNGKey(0)
    # Small NCHW input consistent with what a conv net would feed into Flatten.
    N, C, H, W = 2, 4, 16, 16
    x = jax.random.normal(key, (N, C, H, W), dtype=jnp.float32)

    # Flatten(start_dim=1, end_dim=-1): (2, 4, 16, 16) -> (2, 1024)
    y = flatten_pallas(x, start_dim=1, end_dim=-1)
    y = jax.block_until_ready(y)

    y_ref = jnp.reshape(x, (N, C * H * W))
    assert y.shape == (N, C * H * W), y.shape
    assert y.dtype == x.dtype
    assert bool(jnp.array_equal(y, y_ref)), "Pallas flatten mismatch vs reference"

    # Partial flatten (start_dim=1, end_dim=2): (2, 4, 16, 16) -> (2, 64, 16)
    y2 = jax.block_until_ready(flatten_pallas(x, start_dim=1, end_dim=2))
    assert y2.shape == (N, C * H, W), y2.shape
    assert bool(jnp.array_equal(y2, jnp.reshape(x, (N, C * H, W))))

    # Sub-32-bit dtype path (bf16): tile sizing is byte-scaled.
    xb = x.astype(jnp.bfloat16)
    y3 = jax.block_until_ready(flatten_pallas(xb))
    assert y3.shape == (N, C * H * W)
    assert y3.dtype == jnp.bfloat16
    assert bool(jnp.array_equal(y3, jnp.reshape(xb, (N, C * H * W))))

    print("KERNEL_OK")
</pallas_src>

<mosaic_0001>
module attributes {stable_mosaic.version = 11 : i64} {
  func.func @_copy_kernel(%arg0: i32, %arg1: i32, %arg2: memref<2x1024xf32, #tpu.memory_space<vmem>>, %arg3: memref<2x1024xf32, #tpu.memory_space<vmem>>) attributes {dimension_semantics = [#tpu.dimension_semantics<parallel>, #tpu.dimension_semantics<parallel>], iteration_bounds = array<i64: 1, 1>, scalar_prefetch = 0 : i64, scratch_operands = 0 : i64, tpu.core_type = #tpu.core_type<tc>, window_params = [{transform_indices = @transform_0, window_bounds = array<i64: 2, 1024>}, {transform_indices = @transform_1, window_bounds = array<i64: 2, 1024>}]} {
    %c0 = arith.constant 0 : index
    %c0_0 = arith.constant 0 : index
    %0 = vector.load %arg2[%c0, %c0_0] : memref<2x1024xf32, #tpu.memory_space<vmem>>, vector<2x1024xf32>
    %c0_1 = arith.constant 0 : index
    %c0_2 = arith.constant 0 : index
    %1 = vector.load %arg3[%c0_1, %c0_2] : memref<2x1024xf32, #tpu.memory_space<vmem>>, vector<2x1024xf32>
    tpu.vector_store %arg3[%c0_1, %c0_2], %0 {strides = array<i32>} : memref<2x1024xf32, #tpu.memory_space<vmem>>, vector<2x1024xf32>,
    return
  }
  func.func @transform_0(%arg0: i32, %arg1: i32) -> (i32, i32) {
    %c0_i32 = arith.constant 0 : i32
    return %arg0, %arg1 : i32, i32
  }
  func.func @transform_1(%arg0: i32, %arg1: i32) -> (i32, i32) {
    %c0_i32 = arith.constant 0 : i32
    return %arg0, %arg1 : i32, i32
  }
}

</mosaic_0001>

<llo_original>
// kernel: tpu_custom_call.1
$region0: #{tpu_custom_call.1}
  #allocation0 [shape = 'u32[]', space=smem, size = 0x4, offset = 0x4, fixed_abs, tag = 'smem constant byte address 0x4 - core index']
  #allocation1 [shape = 'u32[72,128]{1,0:T(1,128)}', space=vmem, size = 0x9000, scoped, tag = 'internal scratch']
  %s0 = inlined_call_operand.hbm [shape: f32[2,1024], index: 0, kind: input, shape index: {}]
  %s1 = inlined_call_operand.hbm [shape: f32[2,1024], index: 1, kind: output, shape index: {}]
  %s2 = sld [smem:[#allocation0]]
  $region18: #{tpu_custom_call.1} parent=0
    _
  %s4 = ssub.s32 1, %s2
  %s5 = scalar_select 0, %s4, %s2
  $region1: #{tpu_custom_call.1} parent=0
    #allocation2 [shape = 'u8[8192]{0}', space=vmem, size = 0x2000, scoped, tag = 'input window, operand 0, single buffered']
    #allocation3 [shape = 's32[1]{0}', space=sflag, size = 0x4, scoped, tag = 'scoped memory for tpu_custom_call.1']
    #allocation4 [shape = 's32[1]{0}', space=sflag, size = 0x4, scoped, tag = 'scoped memory for tpu_custom_call.1']
    #allocation5 [shape = 'u8[8192]{0}', space=vmem, size = 0x2000, scoped, tag = 'output window, operand 0, single buffered']
    %6 = vsyncpa [#allocation3], 0
    %7 = vsyncpa [#allocation4], 0
    // Predicated region
    $region2: #{tpu_custom_call.1} parent=1 // pred_check
      _
    $region3: #{tpu_custom_call.1} parent=1 // pred_check_branch
      %9 = sbr.rel (0) target = $region5
    $region4: #{tpu_custom_call.1} parent=1 // pred_region
      %11 = vsyncadd [#allocation3], 0
      %s13 = sshll.u32 %s0, 4
      %s14 = int_to_ptr.hbm [resolvable:$true] %s13
      %s15 = sshll.u32 [#allocation2], 4
      %s16 = int_to_ptr.vmem [resolvable:$true] %s15
      %18 = dma.hbm_to_vmem [thread:$0]  %s14, 256, %s16, [#allocation3]
    $region5: #{tpu_custom_call.1} parent=1 // pred_fallthru
      _
    // Predicated region
    $region6: #{tpu_custom_call.1} parent=1 // pred_check
      _
    $region7: #{tpu_custom_call.1} parent=1 // pred_check_branch
      %20 = sbr.rel (0) target = $region9
    $region8: #{tpu_custom_call.1} parent=1 // pred_region
      %22 = dma.done [#allocation3], 256
    $region9: #{tpu_custom_call.1} parent=1 // pred_fallthru
      _
    %v23 = vld [vmem:[#allocation2] sm:$0xff]
    %v24 = vld [vmem:[#allocation2 + $0x8] sm:$0xff]
    %25 = vst [vmem:[#allocation5] sm:$0xff] %v23
    %26 = vst [vmem:[#allocation5 + $0x8] sm:$0xff] %v24
    // Predicated region
    $region10: #{tpu_custom_call.1} parent=1 // pred_check
      _
    $region11: #{tpu_custom_call.1} parent=1 // pred_check_branch
      %28 = sbr.rel (0) target = $region13
    $region12: #{tpu_custom_call.1} parent=1 // pred_region
      %30 = vsyncadd [#allocation4], 0
      %s32 = sshll.u32 [#allocation5], 4
      %s33 = int_to_ptr.vmem [resolvable:$true] %s32
      %s34 = sshll.u32 %s1, 4
      %s35 = int_to_ptr.hbm [resolvable:$true] %s34
      %37 = dma.vmem_to_hbm [thread:$0]  %s33, 256, %s35, [#allocation4]
    $region13: #{tpu_custom_call.1} parent=1 // pred_fallthru
      _
    // Predicated region
    $region14: #{tpu_custom_call.1} parent=1 // pred_check
      _
    $region15: #{tpu_custom_call.1} parent=1 // pred_check_branch
      %39 = sbr.rel (0) target = $region17
    $region16: #{tpu_custom_call.1} parent=1 // pred_region
      %41 = dma.done [#allocation4], 256
    $region17: #{tpu_custom_call.1} parent=1 // pred_fallthru
      _
    %42 = vsyncpa [#allocation3], 1
    %43 = vsyncpa [#allocation4], 1

</llo_original>
